<compile_context>
chip_gen: v7x
topology: tpu7x:2x2x1
jax: 0.10.0
libtpu: 0.0.40
codegen_flags: <defaults>
</compile_context>

<pallas_src>
import functools

import jax
import jax.numpy as jnp
import numpy as np
from jax.experimental import pallas as pl
from jax.experimental.pallas import tpu as pltpu

_LN_EPS = 1e-5  # PyTorch nn.LayerNorm default eps


def _compute_tile(x, gamma, beta, bits, *, negative_slope, layer_norm,
                  gelu_approximate, keep_threshold, inv_q):
    """LayerNorm -> LeakyReLU/GELU -> (optional) dropout on one (TM, D) tile."""
    x = x.astype(jnp.float32)

    # --- nn.LayerNorm(dim_input) (or nn.Identity) ---
    if layer_norm:
        mean = jnp.mean(x, axis=-1, keepdims=True)
        var = jnp.mean(jnp.square(x - mean), axis=-1, keepdims=True)
        x = (x - mean) * jax.lax.rsqrt(var + _LN_EPS)
        x = x * gamma + beta  # gamma/beta are (1, D), broadcast once per tile

    # --- nn.LeakyReLU(negative_slope) if negative_slope >= 0 else nn.GELU() ---
    if negative_slope >= 0.0:
        x = jnp.where(x >= 0.0, x, negative_slope * x)
    else:
        # PyTorch nn.GELU() default is exact (erf). Set gelu_approximate=True
        # to route the transcendental through the EUP (tanh approx).
        x = jax.nn.gelu(x, approximate=gelu_approximate)

    # --- Dropout / ConsistentDropout (inverted-dropout scaling) ---
    if bits is not None:
        keep = bits < jnp.uint32(keep_threshold)        # integer threshold
        x = jnp.where(keep, x * inv_q, 0.0)             # single select + mul
    return x


def _kernel_dropout(x_ref, gamma_ref, beta_ref, bits_ref, o_ref, *,
                    negative_slope, layer_norm, gelu_approximate,
                    keep_threshold, inv_q):
    o_ref[...] = _compute_tile(
        x_ref[...], gamma_ref[...], beta_ref[...], bits_ref[...],
        negative_slope=negative_slope, layer_norm=layer_norm,
        gelu_approximate=gelu_approximate,
        keep_threshold=keep_threshold, inv_q=inv_q,
    ).astype(o_ref.dtype)


def _kernel_plain(x_ref, gamma_ref, beta_ref, o_ref, *,
                  negative_slope, layer_norm, gelu_approximate):
    o_ref[...] = _compute_tile(
        x_ref[...], gamma_ref[...], beta_ref[...], None,
        negative_slope=negative_slope, layer_norm=layer_norm,
        gelu_approximate=gelu_approximate,
        keep_threshold=0, inv_q=1.0,
    ).astype(o_ref.dtype)


def dense_activation(
    x,
    gamma,
    beta,
    seed,
    *,
    negative_slope: float,
    dropout_rate: float,
    layer_norm: bool,
    consistent_dropout: bool = False,
    training: bool = True,
    gelu_approximate: bool = False,
):
    """Pallas implementation of DenseActivation.forward(inputs)."""
    orig_shape = x.shape
    D = int(orig_shape[-1])
    batch = int(orig_shape[0])
    M = int(np.prod(orig_shape[:-1]))
    rows_per_batch = M // batch

    # nn.Dropout only fires in training mode; ConsistentDropout always applies.
    apply_dropout = (float(dropout_rate) > 0.0) and (training or consistent_dropout)

    # --- Row tiling: TM multiple of 8, bounded by a conservative VMEM budget
    # (x f32 + bits u32 + out f32, double-buffered) so it fits v7x's smaller
    # scoped VMEM as well as v5e/v6e. ---
    M8 = max(8, ((M + 7) // 8) * 8)
    bytes_per_row = (4 + 4 + 4) * D
    vmem_budget = 12 * 1024 * 1024
    tm_budget = max(8, (vmem_budget // (2 * bytes_per_row)) // 8 * 8)
    TM = int(min(1024, M8, tm_budget))
    M_pad = ((M8 + TM - 1) // TM) * TM
    grid = (M_pad // TM,)

    x2 = x.reshape(M, D)
    if M_pad != M:
        x2 = jnp.pad(x2, ((0, M_pad - M), (0, 0)))
    gamma2 = jnp.asarray(gamma, jnp.float32).reshape(1, D)
    beta2 = jnp.asarray(beta, jnp.float32).reshape(1, D)

    common = dict(
        negative_slope=float(negative_slope),
        layer_norm=bool(layer_norm),
        gelu_approximate=bool(gelu_approximate),
    )

    in_specs = [
        pl.BlockSpec((TM, D), lambda i: (i, 0)),   # x tile
        pl.BlockSpec((1, D), lambda i: (0, 0)),    # gamma (resident)
        pl.BlockSpec((1, D), lambda i: (0, 0)),    # beta  (resident)
    ]
    args = [x2, gamma2, beta2]

    if apply_dropout:
        q = 1.0 - float(dropout_rate)
        keep_threshold = min(int(round(q * 4294967296.0)), 4294967295)
        key = jax.random.PRNGKey(int(seed))
        if consistent_dropout:
            # ConsistentDropout: mask shape [1] + x.shape[1:], shared across
            # the batch dim -> one (rows_per_batch, D) draw tiled over batch.
            bits_rb = jax.random.bits(key, (rows_per_batch, D), dtype=jnp.uint32)
            bits = jnp.tile(bits_rb, (batch, 1))
        else:
            bits = jax.random.bits(key, (M, D), dtype=jnp.uint32)
        if M_pad != M:
            bits = jnp.pad(bits, ((0, M_pad - M), (0, 0)))
        kernel = functools.partial(
            _kernel_dropout, keep_threshold=keep_threshold, inv_q=1.0 / q,
            **common)
        in_specs.append(pl.BlockSpec((TM, D), lambda i: (i, 0)))
        args.append(bits)
    else:
        kernel = functools.partial(_kernel_plain, **common)

    out2 = pl.pallas_call(
        kernel,
        out_shape=jax.ShapeDtypeStruct((M_pad, D), x.dtype),
        grid=grid,
        in_specs=in_specs,
        out_specs=pl.BlockSpec((TM, D), lambda i: (i, 0)),
        compiler_params=pltpu.CompilerParams(
            dimension_semantics=("parallel",)),
    )(*args)

    if M_pad != M:
        out2 = out2[:M]
    return out2.reshape(orig_shape)


def _reference_no_dropout(x, gamma, beta, *, negative_slope, layer_norm):
    """Pure-JAX reference (dropout disabled) for correctness checking."""
    xf = x.astype(jnp.float32)
    if layer_norm:
        mean = jnp.mean(xf, axis=-1, keepdims=True)
        var = jnp.mean((xf - mean) ** 2, axis=-1, keepdims=True)
        xf = (xf - mean) * jax.lax.rsqrt(var + _LN_EPS)
        xf = xf * gamma + beta
    if negative_slope >= 0.0:
        xf = jnp.where(xf >= 0.0, xf, negative_slope * xf)
    else:
        xf = jax.nn.gelu(xf, approximate=False)
    return xf.astype(x.dtype)


if __name__ == "__main__":
    # Module config: DenseActivation(dim_input, negative_slope, dropout_rate,
    # layer_norm, consistent_dropout).
    dim_input = 32
    negative_slope = 0.01
    dropout_rate = 0.1
    layer_norm = True

    # Small deterministic inputs: (batch=2, seq=8, dim_input=32).
    key = jax.random.PRNGKey(0)
    kx, kg, kb = jax.random.split(key, 3)
    x = jax.random.normal(kx, (2, 8, dim_input), dtype=jnp.float32)
    gamma = 1.0 + 0.1 * jax.random.normal(kg, (dim_input,), dtype=jnp.float32)
    beta = 0.1 * jax.random.normal(kb, (dim_input,), dtype=jnp.float32)

    # 1) Correctness vs pure-JAX reference with dropout disabled.
    out_nodrop = dense_activation(
        x, gamma, beta, seed=0,
        negative_slope=negative_slope, dropout_rate=0.0, layer_norm=layer_norm,
    )
    jax.block_until_ready(out_nodrop)
    ref = _reference_no_dropout(
        x, gamma, beta, negative_slope=negative_slope, layer_norm=layer_norm)
    np.testing.assert_allclose(
        np.asarray(out_nodrop), np.asarray(ref), rtol=1e-5, atol=1e-5)

    # 2) Full module semantics: training-mode standard dropout.
    #    Dropout randomness is distributionally equivalent to torch's but not
    #    bit-identical to its RNG stream.
    out = dense_activation(
        x, gamma, beta, seed=1234,
        negative_slope=negative_slope, dropout_rate=dropout_rate,
        layer_norm=layer_norm, consistent_dropout=False, training=True,
    )
    jax.block_until_ready(out)
    assert out.shape == x.shape and bool(jnp.all(jnp.isfinite(out)))

    # 3) ConsistentDropout path (mask shared across the batch dim).
    out_cd = dense_activation(
        x, gamma, beta, seed=7,
        negative_slope=negative_slope, dropout_rate=dropout_rate,
        layer_norm=layer_norm, consistent_dropout=True, training=True,
    )
    jax.block_until_ready(out_cd)
    assert out_cd.shape == x.shape and bool(jnp.all(jnp.isfinite(out_cd)))

    print("KERNEL_OK")
</pallas_src>

<mosaic_0001>
module attributes {stable_mosaic.version = 11 : i64} {
  func.func @_kernel_plain(%arg0: i32, %arg1: memref<16x32xf32, #tpu.memory_space<vmem>>, %arg2: memref<1x32xf32, #tpu.memory_space<vmem>>, %arg3: memref<1x32xf32, #tpu.memory_space<vmem>>, %arg4: memref<16x32xf32, #tpu.memory_space<vmem>>) attributes {dimension_semantics = [#tpu.dimension_semantics<parallel>], iteration_bounds = array<i64: 1>, scalar_prefetch = 0 : i64, scratch_operands = 0 : i64, tpu.core_type = #tpu.core_type<tc>, window_params = [{transform_indices = @transform_0, window_bounds = array<i64: 16, 32>}, {pipeline_mode = #tpu.pipeline_mode<synchronous>, transform_indices = @transform_1, window_bounds = array<i64: 1, 32>}, {pipeline_mode = #tpu.pipeline_mode<synchronous>, transform_indices = @transform_2, window_bounds = array<i64: 1, 32>}, {transform_indices = @transform_3, window_bounds = array<i64: 16, 32>}]} {
    %c0 = arith.constant 0 : index
    %c0_0 = arith.constant 0 : index
    %0 = vector.load %arg1[%c0, %c0_0] : memref<16x32xf32, #tpu.memory_space<vmem>>, vector<16x32xf32>
    %c0_1 = arith.constant 0 : index
    %c0_2 = arith.constant 0 : index
    %1 = vector.load %arg2[%c0_1, %c0_2] : memref<1x32xf32, #tpu.memory_space<vmem>>, vector<1x32xf32>
    %c0_3 = arith.constant 0 : index
    %c0_4 = arith.constant 0 : index
    %2 = vector.load %arg3[%c0_3, %c0_4] : memref<1x32xf32, #tpu.memory_space<vmem>>, vector<1x32xf32>
    %cst = arith.constant dense<0.000000e+00> : vector<16xf32>
    %3 = vector.multi_reduction <add>, %0, %cst [1] : vector<16x32xf32> to vector<16xf32>
    %4 = vector.shape_cast %3 : vector<16xf32> to vector<16x1xf32>
    %cst_5 = arith.constant 3.200000e+01 : f32
    %5 = vector.broadcast %cst_5 : f32 to vector<16x1xf32>
    %6 = arith.divf %4, %5 : vector<16x1xf32>
    %7 = vector.broadcast %6 : vector<16x1xf32> to vector<16x32xf32>
    %8 = arith.subf %0, %7 : vector<16x32xf32>
    %9 = arith.mulf %8, %8 : vector<16x32xf32>
    %cst_6 = arith.constant dense<0.000000e+00> : vector<16xf32>
    %10 = vector.multi_reduction <add>, %9, %cst_6 [1] : vector<16x32xf32> to vector<16xf32>
    %11 = vector.shape_cast %10 : vector<16xf32> to vector<16x1xf32>
    %cst_7 = arith.constant 3.200000e+01 : f32
    %12 = vector.broadcast %cst_7 : f32 to vector<16x1xf32>
    %13 = arith.divf %11, %12 : vector<16x1xf32>
    %14 = vector.broadcast %6 : vector<16x1xf32> to vector<16x32xf32>
    %15 = arith.subf %0, %14 : vector<16x32xf32>
    %cst_8 = arith.constant 9.99999974E-6 : f32
    %16 = vector.broadcast %cst_8 : f32 to vector<16x1xf32>
    %17 = arith.addf %13, %16 : vector<16x1xf32>
    %18 = math.rsqrt %17 : vector<16x1xf32>
    %19 = vector.broadcast %18 : vector<16x1xf32> to vector<16x32xf32>
    %20 = arith.mulf %15, %19 : vector<16x32xf32>
    %21 = vector.broadcast %1 : vector<1x32xf32> to vector<16x32xf32>
    %22 = arith.mulf %20, %21 : vector<16x32xf32>
    %23 = vector.broadcast %2 : vector<1x32xf32> to vector<16x32xf32>
    %24 = arith.addf %22, %23 : vector<16x32xf32>
    %cst_9 = arith.constant 0.000000e+00 : f32
    %25 = vector.broadcast %cst_9 : f32 to vector<16x32xf32>
    %26 = arith.cmpf oge, %24, %25 : vector<16x32xf32>
    %cst_10 = arith.constant 0.00999999977 : f32
    %27 = vector.broadcast %cst_10 : f32 to vector<16x32xf32>
    %28 = arith.mulf %27, %24 : vector<16x32xf32>
    %29 = arith.select %26, %24, %28 : vector<16x32xi1>, vector<16x32xf32>
    %c0_11 = arith.constant 0 : index
    %c0_12 = arith.constant 0 : index
    %30 = vector.load %arg4[%c0_11, %c0_12] : memref<16x32xf32, #tpu.memory_space<vmem>>, vector<16x32xf32>
    tpu.vector_store %arg4[%c0_11, %c0_12], %29 {strides = array<i32>} : memref<16x32xf32, #tpu.memory_space<vmem>>, vector<16x32xf32>,
    return
  }
  func.func @transform_0(%arg0: i32) -> (i32, i32) {
    %c0_i32 = arith.constant 0 : i32
    %c0_i32_0 = arith.constant 0 : i32
    return %arg0, %c0_i32 : i32, i32
  }
  func.func @transform_1(%arg0: i32) -> (i32, i32) {
    %c0_i32 = arith.constant 0 : i32
    %c0_i32_0 = arith.constant 0 : i32
    %c0_i32_1 = arith.constant 0 : i32
    return %c0_i32, %c0_i32_0 : i32, i32
  }
  func.func @transform_2(%arg0: i32) -> (i32, i32) {
    %c0_i32 = arith.constant 0 : i32
    %c0_i32_0 = arith.constant 0 : i32
    %c0_i32_1 = arith.constant 0 : i32
    return %c0_i32, %c0_i32_0 : i32, i32
  }
  func.func @transform_3(%arg0: i32) -> (i32, i32) {
    %c0_i32 = arith.constant 0 : i32
    %c0_i32_0 = arith.constant 0 : i32
    return %arg0, %c0_i32 : i32, i32
  }
}

</mosaic_0001>

<llo_original>
// kernel: tpu_custom_call.1
$region0: #{tpu_custom_call.1}
  #allocation0 [shape = 'u32[]', space=smem, size = 0x4, offset = 0x4, fixed_abs, tag = 'smem constant byte address 0x4 - core index']
  #allocation1 [shape = 'u32[144,128]{1,0:T(1,128)}', space=vmem, size = 0x12000, scoped, tag = 'internal scratch']
  %s0 = inlined_call_operand.hbm [shape: f32[16,32], index: 0, kind: input, shape index: {}]
  %s1 = inlined_call_operand.vmem [shape: f32[1,32], index: 1, kind: input, shape index: {}]
  %s2 = inlined_call_operand.vmem [shape: f32[1,32], index: 2, kind: input, shape index: {}]
  %s3 = inlined_call_operand.hbm [shape: f32[16,32], index: 3, kind: output, shape index: {}]
  %s4 = sld [smem:[#allocation0]]
  $region26: #{tpu_custom_call.1} parent=0
    _
  %s6 = ssub.s32 1, %s4
  %s7 = scalar_select 0, %s6, %s4
  $region1: #{tpu_custom_call.1} parent=0
    #allocation2 [shape = 'u8[8192]{0}', space=vmem, size = 0x2000, scoped, tag = 'input window, operand 0, single buffered']
    #allocation3 [shape = 's32[1]{0}', space=sflag, size = 0x4, scoped, tag = 'scoped memory for tpu_custom_call.1']
    #allocation4 [shape = 's32[1]{0}', space=sflag, size = 0x4, scoped, tag = 'scoped memory for tpu_custom_call.1']
    #allocation5 [shape = 'u8[8192]{0}', space=vmem, size = 0x2000, scoped, tag = 'output window, operand 0, single buffered']
    %8 = vsyncpa [#allocation3], 0
    %9 = vsyncpa [#allocation4], 0
    // Predicated region
    $region2: #{tpu_custom_call.1} parent=1 // pred_check
      _
    $region3: #{tpu_custom_call.1} parent=1 // pred_check_branch
      %11 = sbr.rel (0) target = $region5
    $region4: #{tpu_custom_call.1} parent=1 // pred_region
      %s13 = ssub.s32 256, 256
      %14 = vsyncadd [#allocation3], %s13
      %s15 = sshll.u32 [#allocation2], 4
      %s16 = int_to_ptr.vmem [resolvable:$true] %s15
      %21 = dma.hbm_to_vmem [thread:$0]  %s0, 256, %s16, [#allocation3], 128, 128, 8
    $region5: #{tpu_custom_call.1} parent=1 // pred_fallthru
      _
    // Predicated region
    $region6: #{tpu_custom_call.1} parent=1 // pred_check
      _
    $region7: #{tpu_custom_call.1} parent=1 // pred_check_branch
      %23 = sbr.rel (0) target = $region9
    $region8: #{tpu_custom_call.1} parent=1 // pred_region
      _
    $region9: #{tpu_custom_call.1} parent=1 // pred_fallthru
      _
    // Predicated region
    $region10: #{tpu_custom_call.1} parent=1 // pred_check
      _
    $region11: #{tpu_custom_call.1} parent=1 // pred_check_branch
      %25 = sbr.rel (0) target = $region13
    $region12: #{tpu_custom_call.1} parent=1 // pred_region
      _
    $region13: #{tpu_custom_call.1} parent=1 // pred_fallthru
      _
    // Predicated region
    $region14: #{tpu_custom_call.1} parent=1 // pred_check
      _
    $region15: #{tpu_custom_call.1} parent=1 // pred_check_branch
      %27 = sbr.rel (0) target = $region17
    $region16: #{tpu_custom_call.1} parent=1 // pred_region
      %28 = dma.done [#allocation3], 256
    $region17: #{tpu_custom_call.1} parent=1 // pred_fallthru
      _
    %v29 = vld [vmem:[#allocation2] sm:$0xff]
    %v30 = vld [vmem:[#allocation2 + $0x8] sm:$0xff]
    %v31 = vld [vmem:[%s1] sm:$0x1]
    %v32 = vld [vmem:[%s2] sm:$0x1]
    %vm33 = vcmask 261120
    %v34 = vsel %vm33, %v29, 0.0
    %35 = vadd.xlane.f32.xlu0 %v34
    %v36 = vpop.xlane.xlu0 %35
    %v37 = vsel %vm33, %v30, 0.0
    %38 = vadd.xlane.f32.xlu0 %v37
    %v39 = vpop.xlane.xlu0 %38
    %v40 = vrcp.pop 32.0
    %v41 = vmul.f32 %v36, %v40
    %v42 = vmul.f32 %v39, %v40
    %v43 = vsub.f32 %v29, %v41
    %v44 = vsub.f32 %v30, %v42
    %v45 = vmul.f32 %v43, %v43
    %v46 = vmul.f32 %v44, %v44
    %v47 = vsel %vm33, %v45, 0.0
    %48 = vadd.xlane.f32.xlu0 %v47
    %v49 = vpop.xlane.xlu0 %48
    %v50 = vsel %vm33, %v46, 0.0
    %51 = vadd.xlane.f32.xlu0 %v50
    %v52 = vpop.xlane.xlu0 %51
    %v53 = vmul.f32 %v49, %v40
    %v54 = vmul.f32 %v52, %v40
    %v55 = vadd.f32 %v53, 1e-05
    %v56 = vadd.f32 %v54, 1e-05
    %v57 = vrsqrt.pop %v55
    %v58 = vrsqrt.pop %v56
    %v59 = vmul.f32 %v43, %v57
    %v60 = vmul.f32 %v44, %v58
    %v62 = vlaneseq
    %v63 = vshrl.u32 %v62, 7
    %v64 = vsub.s32 0, %v63
    %v65 = vrot.slane %v31, %v64
    %v67 = vmul.f32 %v59, %v65
    %v68 = vmul.f32 %v60, %v65
    %v70 = vlaneseq
    %v71 = vshrl.u32 %v70, 7
    %v72 = vsub.s32 0, %v71
    %v73 = vrot.slane %v32, %v72
    %v75 = vadd.f32 %v67, %v73
    %v76 = vadd.f32 %v68, %v73
    %vm77 = vcmp.ge.f32.partialorder %v75, 0.0
    %vm78 = vcmp.ge.f32.partialorder %v76, 0.0
    %v79 = vmul.f32 %v75, 0.01
    %v80 = vmul.f32 %v76, 0.01
    %v81 = vsel %vm77, %v75, %v79
    %v82 = vsel %vm78, %v76, %v80
    %83 = vst.msk [vmem:[#allocation5] sm:$0xff] %vm33, %v81
    %84 = vst.msk [vmem:[#allocation5 + $0x8] sm:$0xff] %vm33, %v82
    // Predicated region
    $region18: #{tpu_custom_call.1} parent=1 // pred_check
      _
    $region19: #{tpu_custom_call.1} parent=1 // pred_check_branch
      %86 = sbr.rel (0) target = $region21
    $region20: #{tpu_custom_call.1} parent=1 // pred_region
      %s88 = ssub.s32 256, 256
      %89 = vsyncadd [#allocation4], %s88
      %s90 = sshll.u32 [#allocation5], 4
      %s91 = int_to_ptr.vmem [resolvable:$true] %s90
      %96 = dma.vmem_to_hbm [thread:$0]  %s91, 256, %s3, [#allocation4], 128, 128, 8
    $region21: #{tpu_custom_call.1} parent=1 // pred_fallthru
      _
    // Predicated region
    $region22: #{tpu_custom_call.1} parent=1 // pred_check
      _
    $region23: #{tpu_custom_call.1} parent=1 // pred_check_branch
      %98 = sbr.rel (0) target = $region25
    $region24: #{tpu_custom_call.1} parent=1 // pred_region
      %99 = dma.done [#allocation4], 256
    $region25: #{tpu_custom_call.1} parent=1 // pred_fallthru
      _
    %100 = vsyncpa [#allocation3], 1
    %101 = vsyncpa [#allocation4], 1

</llo_original>
